<compile_context>
chip_gen: v5e
topology: v5e:2x2
jax: 0.10.0
libtpu: 0.0.40
codegen_flags: <defaults>
</compile_context>

<pallas_src>
import jax
import jax.numpy as jnp
from jax.experimental import pallas as pl
from jax.experimental.pallas import tpu as pltpu


def _round_up(n, m):
    return ((n + m - 1) // m) * m


def _choose_tiling(batch, tb_max=1024):
    """Pick (tile_batch, num_tiles).

    * cap TB at tb_max (amortizes ~0.35us per-grid-step overhead on v6e)
    * keep >= 2 grid steps for non-trivial batches so the "parallel" axis can
      shard across the 2 TensorCores of a v7x chip
    * balance TB against the actual batch so padding waste is <= 16 rows/tile
    """
    n_tiles = max(1, -(-batch // tb_max))
    if batch >= 64 and n_tiles < 2:
        n_tiles = 2
    tb = _round_up(-(-batch // n_tiles), 16)   # 16: bf16 sublane packing
    return tb, n_tiles


def _critic_kernel(cmd_ref, emb_ref, act_ref,
                   w1e_ref, w1a_ref, b1_ref,
                   w2_ref, b2_ref, w3_ref, b3_ref,
                   wq_ref, bq_ref, q_ref):
    # fc1: MXU matmul on the (bf16) emb part, VPU rank-1 updates for the action part
    h = jnp.dot(emb_ref[...], w1e_ref[...], preferred_element_type=jnp.float32)
    act = act_ref[...]                                    # (TB, 2) f32
    w1a = w1a_ref[...]                                    # (2, 256) f32
    h = h + act[:, 0:1] * w1a[0:1, :] + act[:, 1:2] * w1a[1:2, :] + b1_ref[...]
    h = jnp.maximum(h, 0.0)                               # (TB, 256) f32

    # fc2 -> relu
    h = jnp.dot(h.astype(jnp.bfloat16), w2_ref[...],
                preferred_element_type=jnp.float32) + b2_ref[...]
    h = jnp.maximum(h, 0.0)

    # fused head hidden layers [left | straight | right] -> relu
    g = jnp.dot(h.astype(jnp.bfloat16), w3_ref[...],
                preferred_element_type=jnp.float32) + b3_ref[...]
    g = jnp.maximum(g, 0.0)                               # (TB, 768) f32

    # 1-wide output projections: VPU multiply + three 256-lane reductions (f32),
    # instead of a mostly-zero block-diagonal MXU matmul.
    prod = g * wq_ref[...]                                # (TB,768) * (1,768)
    ql = jnp.sum(prod[:, 0:256],   axis=1, keepdims=True)
    qs = jnp.sum(prod[:, 256:512], axis=1, keepdims=True)
    qr = jnp.sum(prod[:, 512:768], axis=1, keepdims=True)

    # fused per-row command select (== torch.gather over stacked heads)
    cmd = cmd_ref[...]                                    # (TB, 1) int32
    q = jnp.where(cmd == 0, ql + bq_ref[0],
                  jnp.where(cmd == 1, qs + bq_ref[1], qr + bq_ref[2]))
    q_ref[...] = q


def critic_forward(params, emb, command, action):
    """emb: (B, emb_size) f32, command: (B,) int32 in {0,1,2}, action: (B, 2) f32."""
    B, EMB = emb.shape
    TB, n_tiles = _choose_tiling(B)
    B_pad = TB * n_tiles

    emb_b = emb.astype(jnp.bfloat16)                      # halve the streamed bytes
    act_f = action.astype(jnp.float32)
    cmd = command.reshape(-1, 1).astype(jnp.int32)
    if B_pad != B:
        pad = B_pad - B
        emb_b = jnp.pad(emb_b, ((0, pad), (0, 0)))
        act_f = jnp.pad(act_f, ((0, pad), (0, 0)))
        cmd = jnp.pad(cmd, ((0, pad), (0, 0)))

    q = pl.pallas_call(
        _critic_kernel,
        out_shape=jax.ShapeDtypeStruct((B_pad, 1), jnp.float32),
        grid=(n_tiles,),
        in_specs=[
            pl.BlockSpec((TB, 1), lambda i: (i, 0)),       # command
            pl.BlockSpec((TB, EMB), lambda i: (i, 0)),     # emb (bf16)
            pl.BlockSpec((TB, 2), lambda i: (i, 0)),       # action (f32)
            pl.BlockSpec((EMB, 256), lambda i: (0, 0)),    # w1_emb (bf16, resident)
            pl.BlockSpec((2, 256), lambda i: (0, 0)),      # w1_act (f32)
            pl.BlockSpec((1, 256), lambda i: (0, 0)),      # b1
            pl.BlockSpec((256, 256), lambda i: (0, 0)),    # w2 (bf16)
            pl.BlockSpec((1, 256), lambda i: (0, 0)),      # b2
            pl.BlockSpec((256, 768), lambda i: (0, 0)),    # fused w3 (bf16)
            pl.BlockSpec((1, 768), lambda i: (0, 0)),      # fused b3
            pl.BlockSpec((1, 768), lambda i: (0, 0)),      # fused out weights (f32 row)
            pl.BlockSpec(memory_space=pltpu.MemorySpace.SMEM),  # out biases (3,) f32
        ],
        out_specs=pl.BlockSpec((TB, 1), lambda i: (i, 0)),
        compiler_params=pltpu.CompilerParams(
            dimension_semantics=("parallel",)),
    )(cmd, emb_b, act_f,
      params["w1e"], params["w1a"], params["b1"],
      params["w2"], params["b2"], params["w3"], params["b3"],
      params["wq"], params["bq"])

    return q[:B]                                           # (B, 1)


def _init_linear(key, fan_in, fan_out):
    """PyTorch nn.Linear default init (uniform +/- 1/sqrt(fan_in)); weight transposed."""
    kw, kb = jax.random.split(key)
    bound = 1.0 / jnp.sqrt(fan_in)
    w = jax.random.uniform(kw, (fan_in, fan_out), jnp.float32, -bound, bound)
    b = jax.random.uniform(kb, (1, fan_out), jnp.float32, -bound, bound)
    return w, b


def init_critic_params(key, emb_size):
    """Returns (kernel_params, reference_params)."""
    K = emb_size + 2
    ks = jax.random.split(key, 8)

    w1, b1 = _init_linear(ks[0], K, 256)
    w2, b2 = _init_linear(ks[1], 256, 256)
    w3l, b3l = _init_linear(ks[2], 256, 256)
    wol, bol = _init_linear(ks[3], 256, 1)
    w3s, b3s = _init_linear(ks[4], 256, 256)
    wos, bos = _init_linear(ks[5], 256, 1)
    w3r, b3r = _init_linear(ks[6], 256, 256)
    wor, bor = _init_linear(ks[7], 256, 1)

    # --- fused kernel-facing params ---
    w1e = w1[:emb_size]                                    # (emb, 256) -> MXU (bf16)
    w1a = w1[emb_size:]                                    # (2, 256)   -> VPU (f32)
    w3 = jnp.concatenate([w3l, w3s, w3r], axis=1)          # (256, 768)
    b3 = jnp.concatenate([b3l, b3s, b3r], axis=1)          # (1, 768)
    wq = jnp.concatenate([wol[:, 0], wos[:, 0], wor[:, 0]]).reshape(1, 768)
    bq = jnp.array([bol[0, 0], bos[0, 0], bor[0, 0]], jnp.float32)   # (3,)

    kernel_params = {
        "w1e": w1e.astype(jnp.bfloat16), "w1a": w1a, "b1": b1,
        "w2": w2.astype(jnp.bfloat16), "b2": b2,
        "w3": w3.astype(jnp.bfloat16), "b3": b3,
        "wq": wq, "bq": bq,
    }
    ref_params = {
        "w1": w1, "b1": b1, "w2": w2, "b2": b2,
        "w3l": w3l, "b3l": b3l, "wol": wol, "bol": bol,
        "w3s": w3s, "b3s": b3s, "wos": wos, "bos": bos,
        "w3r": w3r, "b3r": b3r, "wor": wor, "bor": bor,
    }
    return kernel_params, ref_params


def critic_reference(p, emb, command, action):
    """Pure-JAX f32 reference of the original PyTorch forward (for verification)."""
    x = jnp.concatenate((emb, action), axis=1)
    relu = lambda v: jnp.maximum(v, 0.0)
    h = relu(x @ p["w1"] + p["b1"])
    h = relu(h @ p["w2"] + p["b2"])
    ql = relu(h @ p["w3l"] + p["b3l"]) @ p["wol"] + p["bol"]
    qs = relu(h @ p["w3s"] + p["b3s"]) @ p["wos"] + p["bos"]
    qr = relu(h @ p["w3r"] + p["b3r"]) @ p["wor"] + p["bor"]
    stacked = jnp.stack((ql, qs, qr), axis=0)              # (3, B, 1)
    return jnp.take_along_axis(stacked, command.reshape(1, -1, 1), axis=0)[0]


if __name__ == "__main__":
    B = 4
    EMB = 32

    key = jax.random.PRNGKey(0)
    k_params, k_emb, k_act, k_cmd = jax.random.split(key, 4)

    kernel_params, ref_params = init_critic_params(k_params, EMB)
    emb = jax.random.normal(k_emb, (B, EMB), jnp.float32)
    action = jax.random.normal(k_act, (B, 2), jnp.float32)
    command = jax.random.randint(k_cmd, (B,), 0, 3, jnp.int32)

    out = critic_forward(kernel_params, emb, command, action)
    out = jax.block_until_ready(out)

    ref = critic_reference(ref_params, emb, command, action)
    assert out.shape == (B, 1), out.shape
    # bf16 weights/activations on the MXU path vs f32 reference -> loosened tolerance
    assert jnp.allclose(out, ref, atol=5e-2, rtol=5e-2), (out, ref)

    print("KERNEL_OK")
</pallas_src>

<mosaic_0001>
module attributes {stable_mosaic.version = 11 : i64} {
  func.func @_critic_kernel(%arg0: i32, %arg1: memref<16x1xi32, #tpu.memory_space<vmem>>, %arg2: memref<16x32xbf16, #tpu.memory_space<vmem>>, %arg3: memref<16x2xf32, #tpu.memory_space<vmem>>, %arg4: memref<32x256xbf16, #tpu.memory_space<vmem>>, %arg5: memref<2x256xf32, #tpu.memory_space<vmem>>, %arg6: memref<1x256xf32, #tpu.memory_space<vmem>>, %arg7: memref<256x256xbf16, #tpu.memory_space<vmem>>, %arg8: memref<1x256xf32, #tpu.memory_space<vmem>>, %arg9: memref<256x768xbf16, #tpu.memory_space<vmem>>, %arg10: memref<1x768xf32, #tpu.memory_space<vmem>>, %arg11: memref<1x768xf32, #tpu.memory_space<vmem>>, %arg12: memref<3xf32, #tpu.memory_space<smem>>, %arg13: memref<16x1xf32, #tpu.memory_space<vmem>>) attributes {dimension_semantics = [#tpu.dimension_semantics<parallel>], iteration_bounds = array<i64: 1>, scalar_prefetch = 0 : i64, scratch_operands = 0 : i64, tpu.core_type = #tpu.core_type<tc>, window_params = [{transform_indices = @transform_0, window_bounds = array<i64: 16, 1>}, {transform_indices = @transform_1, window_bounds = array<i64: 16, 32>}, {transform_indices = @transform_2, window_bounds = array<i64: 16, 2>}, {pipeline_mode = #tpu.pipeline_mode<synchronous>, transform_indices = @transform_3, window_bounds = array<i64: 32, 256>}, {pipeline_mode = #tpu.pipeline_mode<synchronous>, transform_indices = @transform_4, window_bounds = array<i64: 2, 256>}, {pipeline_mode = #tpu.pipeline_mode<synchronous>, transform_indices = @transform_5, window_bounds = array<i64: 1, 256>}, {pipeline_mode = #tpu.pipeline_mode<synchronous>, transform_indices = @transform_6, window_bounds = array<i64: 256, 256>}, {pipeline_mode = #tpu.pipeline_mode<synchronous>, transform_indices = @transform_7, window_bounds = array<i64: 1, 256>}, {pipeline_mode = #tpu.pipeline_mode<synchronous>, transform_indices = @transform_8, window_bounds = array<i64: 256, 768>}, {pipeline_mode = #tpu.pipeline_mode<synchronous>, transform_indices = @transform_9, window_bounds = array<i64: 1, 768>}, {pipeline_mode = #tpu.pipeline_mode<synchronous>, transform_indices = @transform_10, window_bounds = array<i64: 1, 768>}, {transform_indices = @transform_11, window_bounds = array<i64: 3>}, {transform_indices = @transform_12, window_bounds = array<i64: 16, 1>}]} {
    %c0 = arith.constant 0 : index
    %c0_0 = arith.constant 0 : index
    %0 = vector.load %arg2[%c0, %c0_0] : memref<16x32xbf16, #tpu.memory_space<vmem>>, vector<16x32xbf16>
    %c0_1 = arith.constant 0 : index
    %c0_2 = arith.constant 0 : index
    %1 = vector.load %arg4[%c0_1, %c0_2] : memref<32x256xbf16, #tpu.memory_space<vmem>>, vector<32x256xbf16>
    %cst = arith.constant dense<0.000000e+00> : vector<16x256xf32>
    %2 = tpu.matmul %0, %1, %cst {dimension_numbers = #tpu.dot_dimension_numbers<[1], [0], [0], [1], [0, 0, 1, 1], [], []>} : vector<16x32xbf16>, vector<32x256xbf16>, vector<16x256xf32> -> vector<16x256xf32>
    %c0_3 = arith.constant 0 : index
    %c0_4 = arith.constant 0 : index
    %3 = vector.load %arg3[%c0_3, %c0_4] : memref<16x2xf32, #tpu.memory_space<vmem>>, vector<16x2xf32>
    %c0_5 = arith.constant 0 : index
    %c0_6 = arith.constant 0 : index
    %4 = vector.load %arg5[%c0_5, %c0_6] : memref<2x256xf32, #tpu.memory_space<vmem>>, vector<2x256xf32>
    %5 = vector.extract_strided_slice %3 {offsets = [0, 0], sizes = [16, 1], strides = [1, 1]} : vector<16x2xf32> to vector<16x1xf32>
    %6 = vector.extract_strided_slice %4 {offsets = [0, 0], sizes = [1, 256], strides = [1, 1]} : vector<2x256xf32> to vector<1x256xf32>
    %7 = vector.broadcast %5 : vector<16x1xf32> to vector<16x256xf32>
    %8 = vector.broadcast %6 : vector<1x256xf32> to vector<16x256xf32>
    %9 = arith.mulf %7, %8 : vector<16x256xf32>
    %10 = arith.addf %2, %9 : vector<16x256xf32>
    %11 = vector.extract_strided_slice %3 {offsets = [0, 1], sizes = [16, 1], strides = [1, 1]} : vector<16x2xf32> to vector<16x1xf32>
    %12 = vector.extract_strided_slice %4 {offsets = [1, 0], sizes = [1, 256], strides = [1, 1]} : vector<2x256xf32> to vector<1x256xf32>
    %13 = vector.broadcast %11 : vector<16x1xf32> to vector<16x256xf32>
    %14 = vector.broadcast %12 : vector<1x256xf32> to vector<16x256xf32>
    %15 = arith.mulf %13, %14 : vector<16x256xf32>
    %16 = arith.addf %10, %15 : vector<16x256xf32>
    %c0_7 = arith.constant 0 : index
    %c0_8 = arith.constant 0 : index
    %17 = vector.load %arg6[%c0_7, %c0_8] : memref<1x256xf32, #tpu.memory_space<vmem>>, vector<1x256xf32>
    %18 = vector.broadcast %17 : vector<1x256xf32> to vector<16x256xf32>
    %19 = arith.addf %16, %18 : vector<16x256xf32>
    %cst_9 = arith.constant 0.000000e+00 : f32
    %20 = vector.broadcast %cst_9 : f32 to vector<16x256xf32>
    %21 = arith.maximumf %19, %20 : vector<16x256xf32>
    %22 = arith.truncf %21 : vector<16x256xf32> to vector<16x256xbf16>
    %c0_10 = arith.constant 0 : index
    %c0_11 = arith.constant 0 : index
    %23 = vector.load %arg7[%c0_10, %c0_11] : memref<256x256xbf16, #tpu.memory_space<vmem>>, vector<256x256xbf16>
    %cst_12 = arith.constant dense<0.000000e+00> : vector<16x256xf32>
    %24 = tpu.matmul %22, %23, %cst_12 {dimension_numbers = #tpu.dot_dimension_numbers<[1], [0], [0], [1], [0, 0, 1, 1], [], []>} : vector<16x256xbf16>, vector<256x256xbf16>, vector<16x256xf32> -> vector<16x256xf32>
    %c0_13 = arith.constant 0 : index
    %c0_14 = arith.constant 0 : index
    %25 = vector.load %arg8[%c0_13, %c0_14] : memref<1x256xf32, #tpu.memory_space<vmem>>, vector<1x256xf32>
    %26 = vector.broadcast %25 : vector<1x256xf32> to vector<16x256xf32>
    %27 = arith.addf %24, %26 : vector<16x256xf32>
    %cst_15 = arith.constant 0.000000e+00 : f32
    %28 = vector.broadcast %cst_15 : f32 to vector<16x256xf32>
    %29 = arith.maximumf %27, %28 : vector<16x256xf32>
    %30 = arith.truncf %29 : vector<16x256xf32> to vector<16x256xbf16>
    %c0_16 = arith.constant 0 : index
    %c0_17 = arith.constant 0 : index
    %31 = vector.load %arg9[%c0_16, %c0_17] : memref<256x768xbf16, #tpu.memory_space<vmem>>, vector<256x768xbf16>
    %cst_18 = arith.constant dense<0.000000e+00> : vector<16x768xf32>
    %32 = tpu.matmul %30, %31, %cst_18 {dimension_numbers = #tpu.dot_dimension_numbers<[1], [0], [0], [1], [0, 0, 1, 1], [], []>} : vector<16x256xbf16>, vector<256x768xbf16>, vector<16x768xf32> -> vector<16x768xf32>
    %c0_19 = arith.constant 0 : index
    %c0_20 = arith.constant 0 : index
    %33 = vector.load %arg10[%c0_19, %c0_20] : memref<1x768xf32, #tpu.memory_space<vmem>>, vector<1x768xf32>
    %34 = vector.broadcast %33 : vector<1x768xf32> to vector<16x768xf32>
    %35 = arith.addf %32, %34 : vector<16x768xf32>
    %cst_21 = arith.constant 0.000000e+00 : f32
    %36 = vector.broadcast %cst_21 : f32 to vector<16x768xf32>
    %37 = arith.maximumf %35, %36 : vector<16x768xf32>
    %c0_22 = arith.constant 0 : index
    %c0_23 = arith.constant 0 : index
    %38 = vector.load %arg11[%c0_22, %c0_23] : memref<1x768xf32, #tpu.memory_space<vmem>>, vector<1x768xf32>
    %39 = vector.broadcast %38 : vector<1x768xf32> to vector<16x768xf32>
    %40 = arith.mulf %37, %39 : vector<16x768xf32>
    %41 = vector.extract_strided_slice %40 {offsets = [0, 0], sizes = [16, 256], strides = [1, 1]} : vector<16x768xf32> to vector<16x256xf32>
    %cst_24 = arith.constant dense<0.000000e+00> : vector<16xf32>
    %42 = vector.multi_reduction <add>, %41, %cst_24 [1] : vector<16x256xf32> to vector<16xf32>
    %43 = vector.shape_cast %42 : vector<16xf32> to vector<16x1xf32>
    %44 = vector.extract_strided_slice %40 {offsets = [0, 256], sizes = [16, 256], strides = [1, 1]} : vector<16x768xf32> to vector<16x256xf32>
    %cst_25 = arith.constant dense<0.000000e+00> : vector<16xf32>
    %45 = vector.multi_reduction <add>, %44, %cst_25 [1] : vector<16x256xf32> to vector<16xf32>
    %46 = vector.shape_cast %45 : vector<16xf32> to vector<16x1xf32>
    %47 = vector.extract_strided_slice %40 {offsets = [0, 512], sizes = [16, 256], strides = [1, 1]} : vector<16x768xf32> to vector<16x256xf32>
    %cst_26 = arith.constant dense<0.000000e+00> : vector<16xf32>
    %48 = vector.multi_reduction <add>, %47, %cst_26 [1] : vector<16x256xf32> to vector<16xf32>
    %49 = vector.shape_cast %48 : vector<16xf32> to vector<16x1xf32>
    %c0_27 = arith.constant 0 : index
    %c0_28 = arith.constant 0 : index
    %50 = vector.load %arg1[%c0_27, %c0_28] : memref<16x1xi32, #tpu.memory_space<vmem>>, vector<16x1xi32>
    %c0_i32 = arith.constant 0 : i32
    %51 = vector.broadcast %c0_i32 : i32 to vector<16x1xi32>
    %52 = arith.cmpi eq, %50, %51 : vector<16x1xi32>
    %c0_29 = arith.constant 0 : index
    %53 = memref.load %arg12[%c0_29] : memref<3xf32, #tpu.memory_space<smem>>
    %54 = vector.broadcast %53 : f32 to vector<16x1xf32>
    %55 = arith.addf %43, %54 : vector<16x1xf32>
    %c1_i32 = arith.constant 1 : i32
    %56 = vector.broadcast %c1_i32 : i32 to vector<16x1xi32>
    %57 = arith.cmpi eq, %50, %56 : vector<16x1xi32>
    %c1 = arith.constant 1 : index
    %58 = memref.load %arg12[%c1] : memref<3xf32, #tpu.memory_space<smem>>
    %59 = vector.broadcast %58 : f32 to vector<16x1xf32>
    %60 = arith.addf %46, %59 : vector<16x1xf32>
    %c2 = arith.constant 2 : index
    %61 = memref.load %arg12[%c2] : memref<3xf32, #tpu.memory_space<smem>>
    %62 = vector.broadcast %61 : f32 to vector<16x1xf32>
    %63 = arith.addf %49, %62 : vector<16x1xf32>
    %64 = arith.select %57, %60, %63 : vector<16x1xi1>, vector<16x1xf32>
    %65 = arith.select %52, %55, %64 : vector<16x1xi1>, vector<16x1xf32>
    %c0_30 = arith.constant 0 : index
    %c0_31 = arith.constant 0 : index
    %66 = vector.load %arg13[%c0_30, %c0_31] : memref<16x1xf32, #tpu.memory_space<vmem>>, vector<16x1xf32>
    tpu.vector_store %arg13[%c0_30, %c0_31], %65 {strides = array<i32>} : memref<16x1xf32, #tpu.memory_space<vmem>>, vector<16x1xf32>,
    return
  }
  func.func @transform_0(%arg0: i32) -> (i32, i32) {
    %c0_i32 = arith.constant 0 : i32
    %c0_i32_0 = arith.constant 0 : i32
    return %arg0, %c0_i32 : i32, i32
  }
  func.func @transform_1(%arg0: i32) -> (i32, i32) {
    %c0_i32 = arith.constant 0 : i32
    %c0_i32_0 = arith.constant 0 : i32
    return %arg0, %c0_i32 : i32, i32
  }
  func.func @transform_2(%arg0: i32) -> (i32, i32) {
    %c0_i32 = arith.constant 0 : i32
    %c0_i32_0 = arith.constant 0 : i32
    return %arg0, %c0_i32 : i32, i32
  }
  func.func @transform_3(%arg0: i32) -> (i32, i32) {
    %c0_i32 = arith.constant 0 : i32
    %c0_i32_0 = arith.constant 0 : i32
    %c0_i32_1 = arith.constant 0 : i32
    return %c0_i32, %c0_i32_0 : i32, i32
  }
  func.func @transform_4(%arg0: i32) -> (i32, i32) {
    %c0_i32 = arith.constant 0 : i32
    %c0_i32_0 = arith.constant 0 : i32
    %c0_i32_1 = arith.constant 0 : i32
    return %c0_i32, %c0_i32_0 : i32, i32
  }
  func.func @transform_5(%arg0: i32) -> (i32, i32) {
    %c0_i32 = arith.constant 0 : i32
    %c0_i32_0 = arith.constant 0 : i32
    %c0_i32_1 = arith.constant 0 : i32
    return %c0_i32, %c0_i32_0 : i32, i32
  }
  func.func @transform_6(%arg0: i32) -> (i32, i32) {
    %c0_i32 = arith.constant 0 : i32
    %c0_i32_0 = arith.constant 0 : i32
    %c0_i32_1 = arith.constant 0 : i32
    return %c0_i32, %c0_i32_0 : i32, i32
  }
  func.func @transform_7(%arg0: i32) -> (i32, i32) {
    %c0_i32 = arith.constant 0 : i32
    %c0_i32_0 = arith.constant 0 : i32
    %c0_i32_1 = arith.constant 0 : i32
    return %c0_i32, %c0_i32_0 : i32, i32
  }
  func.func @transform_8(%arg0: i32) -> (i32, i32) {
    %c0_i32 = arith.constant 0 : i32
    %c0_i32_0 = arith.constant 0 : i32
    %c0_i32_1 = arith.constant 0 : i32
    return %c0_i32, %c0_i32_0 : i32, i32
  }
  func.func @transform_9(%arg0: i32) -> (i32, i32) {
    %c0_i32 = arith.constant 0 : i32
    %c0_i32_0 = arith.constant 0 : i32
    %c0_i32_1 = arith.constant 0 : i32
    return %c0_i32, %c0_i32_0 : i32, i32
  }
  func.func @transform_10(%arg0: i32) -> (i32, i32) {
    %c0_i32 = arith.constant 0 : i32
    %c0_i32_0 = arith.constant 0 : i32
    %c0_i32_1 = arith.constant 0 : i32
    return %c0_i32, %c0_i32_0 : i32, i32
  }
  func.func @transform_11(%arg0: i32) -> i32 {
    %c0_i32 = arith.constant 0 : i32
    %c0_i32_0 = arith.constant 0 : i32
    return %c0_i32 : i32
  }
  func.func @transform_12(%arg0: i32) -> (i32, i32) {
    %c0_i32 = arith.constant 0 : i32
    %c0_i32_0 = arith.constant 0 : i32
    return %arg0, %c0_i32 : i32, i32
  }
}

</mosaic_0001>

<llo_original>
// kernel: tpu_custom_call.1
$region0: #{tpu_custom_call.1}
  #allocation0 [shape = 'u32[]', space=smem, size = 0x4, offset = 0x4, fixed_abs, tag = 'smem constant byte address 0x4 - core index']
  #allocation1 [shape = 'u32[72,128]{1,0:T(1,128)}', space=vmem, size = 0x9000, scoped, tag = 'internal scratch']
  %s0 = inlined_call_operand.vmem [shape: s32[16,1], index: 0, kind: input, shape index: {}]
  %s1 = inlined_call_operand.hbm [shape: bf16[16,32], index: 1, kind: input, shape index: {}]
  %s2 = inlined_call_operand.vmem [shape: f32[16,2], index: 2, kind: input, shape index: {}]
  %s3 = inlined_call_operand.vmem [shape: bf16[32,256], index: 3, kind: input, shape index: {}]
  %s4 = inlined_call_operand.hbm [shape: f32[2,256], index: 4, kind: input, shape index: {}]
  %s5 = inlined_call_operand.hbm [shape: f32[1,256], index: 5, kind: input, shape index: {}]
  %s6 = inlined_call_operand.hbm [shape: bf16[256,256], index: 6, kind: input, shape index: {}]
  %s7 = inlined_call_operand.hbm [shape: f32[1,256], index: 7, kind: input, shape index: {}]
  %s8 = inlined_call_operand.hbm [shape: bf16[256,768], index: 8, kind: input, shape index: {}]
  %s9 = inlined_call_operand.vmem [shape: f32[1,768], index: 9, kind: input, shape index: {}]
  %s10 = inlined_call_operand.hbm [shape: f32[1,768], index: 10, kind: input, shape index: {}]
  %s11 = inlined_call_operand.vmem [shape: f32[3], index: 11, kind: input, shape index: {}]
  %s12 = inlined_call_operand.vmem [shape: f32[16,1], index: 12, kind: output, shape index: {}]
  %s13 = sld [smem:[#allocation0]]
  $region90: #{tpu_custom_call.1} parent=0
    _
  %s15 = ssub.s32 1, %s13
  %s16 = scalar_select 0, %s15, %s13
  $region1: #{tpu_custom_call.1} parent=0
    #allocation2 [shape = 'u8[4096]{0}', space=vmem, size = 0x1000, scoped, tag = 'input window, operand 1, single buffered']
    #allocation3 [shape = 's32[1]{0}', space=sflag, size = 0x4, scoped, tag = 'scoped memory for tpu_custom_call.1']
    #allocation4 [shape = 's32[1]{0}', space=sflag, size = 0x4, scoped, tag = 'scoped memory for tpu_custom_call.1']
    #allocation5 [shape = 'u8[2048]{0}', space=vmem, size = 0x800, scoped, tag = 'input window, operand 4, single buffered']
    #allocation6 [shape = 's32[1]{0}', space=sflag, size = 0x4, scoped, tag = 'scoped memory for tpu_custom_call.1']
    #allocation7 [shape = 'u8[1024]{0}', space=vmem, size = 0x400, scoped, tag = 'input window, operand 5, single buffered']
    #allocation8 [shape = 'u8[131072]{0}', space=vmem, size = 0x20000, scoped, tag = 'input window, operand 6, single buffered']
    #allocation9 [shape = 's32[1]{0}', space=sflag, size = 0x4, scoped, tag = 'scoped memory for tpu_custom_call.1']
    #allocation10 [shape = 'u8[1024]{0}', space=vmem, size = 0x400, scoped, tag = 'input window, operand 7, single buffered']
    #allocation11 [shape = 'u8[393216]{0}', space=vmem, size = 0x60000, scoped, tag = 'input window, operand 8, single buffered']
    #allocation12 [shape = 's32[1]{0}', space=sflag, size = 0x4, scoped, tag = 'scoped memory for tpu_custom_call.1']
    #allocation13 [shape = 'u8[3072]{0}', space=vmem, size = 0xc00, scoped, tag = 'input window, operand 10, single buffered']
    #allocation14 [shape = 'u8[512]{0}', space=smem, size = 0x200, scoped, tag = 'input window, operand 11, single buffered']
    %17 = vsyncpa [#allocation3], 0
    %18 = vsyncpa [#allocation6], 0
    %19 = vsyncpa [#allocation9], 0
    %20 = vsyncpa [#allocation12], 0
    %21 = vsyncpa [#allocation4], 0
    // Predicated region
    $region2: #{tpu_custom_call.1} parent=1 // pred_check
      _
    $region3: #{tpu_custom_call.1} parent=1 // pred_check_branch
      %23 = sbr.rel (0) target = $region5
    $region4: #{tpu_custom_call.1} parent=1 // pred_region
      _
    $region5: #{tpu_custom_call.1} parent=1 // pred_fallthru
      _
    // Predicated region
    $region6: #{tpu_custom_call.1} parent=1 // pred_check
      _
    $region7: #{tpu_custom_call.1} parent=1 // pred_check_branch
      %25 = sbr.rel (0) target = $region9
    $region8: #{tpu_custom_call.1} parent=1 // pred_region
      %27 = vsyncadd [#allocation3], 0
      %s28 = sshll.u32 %s1, 4
      %s29 = int_to_ptr.hbm [resolvable:$true] %s28
      %s30 = sshll.u32 [#allocation2], 4
      %s31 = int_to_ptr.vmem [resolvable:$true] %s30
      %36 = dma.hbm_to_vmem [thread:$0]  %s29, 128, %s31, [#allocation3], 64, 64, 4
    $region9: #{tpu_custom_call.1} parent=1 // pred_fallthru
      _
    // Predicated region
    $region10: #{tpu_custom_call.1} parent=1 // pred_check
      _
    $region11: #{tpu_custom_call.1} parent=1 // pred_check_branch
      %38 = sbr.rel (0) target = $region13
    $region12: #{tpu_custom_call.1} parent=1 // pred_region
      _
    $region13: #{tpu_custom_call.1} parent=1 // pred_fallthru
      _
    // Predicated region
    $region14: #{tpu_custom_call.1} parent=1 // pred_check
      _
    $region15: #{tpu_custom_call.1} parent=1 // pred_check_branch
      %40 = sbr.rel (0) target = $region17
    $region16: #{tpu_custom_call.1} parent=1 // pred_region
      _
    $region17: #{tpu_custom_call.1} parent=1 // pred_fallthru
      _
    // Predicated region
    $region18: #{tpu_custom_call.1} parent=1 // pred_check
      _
    $region19: #{tpu_custom_call.1} parent=1 // pred_check_branch
      %42 = sbr.rel (0) target = $region21
    $region20: #{tpu_custom_call.1} parent=1 // pred_region
      %44 = vsyncadd [#allocation6], 0
      %s46 = sshll.u32 %s4, 4
      %s47 = int_to_ptr.hbm [resolvable:$true] %s46
      %s48 = sshll.u32 [#allocation5], 4
      %s49 = int_to_ptr.vmem [resolvable:$true] %s48
      %51 = dma.hbm_to_vmem [thread:$0]  %s47, 64, %s49, [#allocation6]
    $region21: #{tpu_custom_call.1} parent=1 // pred_fallthru
      _
    // Predicated region
    $region22: #{tpu_custom_call.1} parent=1 // pred_check
      _
    $region23: #{tpu_custom_call.1} parent=1 // pred_check_branch
      %53 = sbr.rel (0) target = $region25
    $region24: #{tpu_custom_call.1} parent=1 // pred_region
      %55 = vsyncadd [#allocation6], 0
      %s57 = sshll.u32 %s5, 4
      %s58 = int_to_ptr.hbm [resolvable:$true] %s57
      %s59 = sshll.u32 [#allocation7], 4
      %s60 = int_to_ptr.vmem [resolvable:$true] %s59
      %62 = dma.hbm_to_vmem [thread:$0]  %s58, 32, %s60, [#allocation6]
    $region25: #{tpu_custom_call.1} parent=1 // pred_fallthru
      _
    // Predicated region
    $region26: #{tpu_custom_call.1} parent=1 // pred_check
      _
    $region27: #{tpu_custom_call.1} parent=1 // pred_check_branch
      %64 = sbr.rel (0) target = $region29
    $region28: #{tpu_custom_call.1} parent=1 // pred_region
      %66 = vsyncadd [#allocation9], 0
      %s67 = sshll.u32 %s6, 4
      %s68 = int_to_ptr.hbm [resolvable:$true] %s67
      %s69 = sshll.u32 [#allocation8], 4
      %s70 = int_to_ptr.vmem [resolvable:$true] %s69
      %75 = dma.hbm_to_vmem [thread:$0]  %s68, 4096, %s70, [#allocation9], 128, 128, 8
    $region29: #{tpu_custom_call.1} parent=1 // pred_fallthru
      _
    // Predicated region
    $region30: #{tpu_custom_call.1} parent=1 // pred_check
      _
    $region31: #{tpu_custom_call.1} parent=1 // pred_check_branch
      %77 = sbr.rel (0) target = $region33
    $region32: #{tpu_custom_call.1} parent=1 // pred_region
      %79 = vsyncadd [#allocation9], 0
      %s81 = sshll.u32 %s7, 4
      %s82 = int_to_ptr.hbm [resolvable:$true] %s81
      %s83 = sshll.u32 [#allocation10], 4
      %s84 = int_to_ptr.vmem [resolvable:$true] %s83
      %86 = dma.hbm_to_vmem [thread:$0]  %s82, 32, %s84, [#allocation9]
    $region33: #{tpu_custom_call.1} parent=1 // pred_fallthru
      _
    // Predicated region
    $region34: #{tpu_custom_call.1} parent=1 // pred_check
      _
    $region35: #{tpu_custom_call.1} parent=1 // pred_check_branch
      %88 = sbr.rel (0) target = $region37
    $region36: #{tpu_custom_call.1} parent=1 // pred_region
      %90 = vsyncadd [#allocation12], 0
      %s91 = sshll.u32 %s8, 4
      %s92 = int_to_ptr.hbm [resolvable:$true] %s91
      %s93 = sshll.u32 [#allocation11], 4
      %s94 = int_to_ptr.vmem [resolvable:$true] %s93
      %99 = dma.hbm_to_vmem [thread:$0]  %s92, 12288, %s94, [#allocation12], 384, 384, 24
    $region37: #{tpu_custom_call.1} parent=1 // pred_fallthru
      _
    // Predicated region
    $region38: #{tpu_custom_call.1} parent=1 // pred_check
      _
    $region39: #{tpu_custom_call.1} parent=1 // pred_check_branch
      %101 = sbr.rel (0) target = $region41
    $region40: #{tpu_custom_call.1} parent=1 // pred_region
      _
    $region41: #{tpu_custom_call.1} parent=1 // pred_fallthru
      _
    // Predicated region
    $region42: #{tpu_custom_call.1} parent=1 // pred_check
      _
    $region43: #{tpu_custom_call.1} parent=1 // pred_check_branch
      %103 = sbr.rel (0) target = $region45
    $region44: #{tpu_custom_call.1} parent=1 // pred_region
      %105 = vsyncadd [#allocation12], 0
      %s107 = sshll.u32 %s10, 4
      %s108 = int_to_ptr.hbm [resolvable:$true] %s107
      %s109 = sshll.u32 [#allocation13], 4
      %s110 = int_to_ptr.vmem [resolvable:$true] %s109
      %112 = dma.hbm_to_vmem [thread:$0]  %s108, 96, %s110, [#allocation12]
    $region45: #{tpu_custom_call.1} parent=1 // pred_fallthru
      _
    // Predicated region
    $region46: #{tpu_custom_call.1} parent=1 // pred_check
      _
    $region47: #{tpu_custom_call.1} parent=1 // pred_check_branch
      %114 = sbr.rel (0) target = $region49
    $region48: #{tpu_custom_call.1} parent=1 // pred_region
      %116 = vsyncadd [#allocation4], 0
      %s118 = sshll.u32 %s11, 4
      %s119 = int_to_ptr.vmem [resolvable:$true] %s118
      %121 = dma.vmem_to_smem %s119, 16, [#allocation14], [#allocation4]
    $region49: #{tpu_custom_call.1} parent=1 // pred_fallthru
      _
    // Predicated region
    $region50: #{tpu_custom_call.1} parent=1 // pred_check
      _
    $region51: #{tpu_custom_call.1} parent=1 // pred_check_branch
      %123 = sbr.rel (0) target = $region53
    $region52: #{tpu_custom_call.1} parent=1 // pred_region
      %125 = dma.done [#allocation3], 128
    $region53: #{tpu_custom_call.1} parent=1 // pred_fallthru
      _
    // Predicated region
    $region54: #{tpu_custom_call.1} parent=1 // pred_check
      _
    $region55: #{tpu_custom_call.1} parent=1 // pred_check_branch
      %127 = sbr.rel (0) target = $region57
    $region56: #{tpu_custom_call.1} parent=1 // pred_region
      %129 = dma.done [#allocation6], 64
    $region57: #{tpu_custom_call.1} parent=1 // pred_fallthru
      _
    // Predicated region
    $region58: #{tpu_custom_call.1} parent=1 // pred_check
      _
    $region59: #{tpu_custom_call.1} parent=1 // pred_check_branch
      %131 = sbr.rel (0) target = $region61
    $region60: #{tpu_custom_call.1} parent=1 // pred_region
      %133 = dma.done [#allocation6], 32
    $region61: #{tpu_custom_call.1} parent=1 // pred_fallthru
      _
    // Predicated region
    $region62: #{tpu_custom_call.1} parent=1 // pred_check
      _
    $region63: #{tpu_custom_call.1} parent=1 // pred_check_branch
      %135 = sbr.rel (0) target = $region65
    $region64: #{tpu_custom_call.1} parent=1 // pred_region
      %137 = dma.done [#allocation9], 4096
    $region65: #{tpu_custom_call.1} parent=1 // pred_fallthru
      _
    // Predicated region
    $region66: #{tpu_custom_call.1} parent=1 // pred_check
      _
    $region67: #{tpu_custom_call.1} parent=1 // pred_check_branch
      %139 = sbr.rel (0) target = $region69
    $region68: #{tpu_custom_call.1} parent=1 // pred_region
      %141 = dma.done [#allocation9], 32
    $region69: #{tpu_custom_call.1} parent=1 // pred_fallthru
      _
    // Predicated region
    $region70: #{tpu_custom_call.1} parent=1 // pred_check
      _
    $region71: #{tpu_custom_call.1} parent=1 // pred_check_branch
      %143 = sbr.rel (0) target = $region73
    $region72: #{tpu_custom_call.1} parent=1 // pred_region
      %145 = dma.done [#allocation12], 12288
    $region73: #{tpu_custom_call.1} parent=1 // pred_fallthru
      _
    // Predicated region
    $region74: #{tpu_custom_call.1} parent=1 // pred_check
      _
    $region75: #{tpu_custom_call.1} parent=1 // pred_check_branch
      %147 = sbr.rel (0) target = $region77
    $region76: #{tpu_custom_call.1} parent=1 // pred_region
      %149 = dma.done [#allocation12], 96
    $region77: #{tpu_custom_call.1} parent=1 // pred_fallthru
      _
    // Predicated region
    $region78: #{tpu_custom_call.1} parent=1 // pred_check
      _
    $region79: #{tpu_custom_call.1} parent=1 // pred_check_branch
      %151 = sbr.rel (0) target = $region81
    $region80: #{tpu_custom_call.1} parent=1 // pred_region
      %153 = dma.done [#allocation4], 16
    $region81: #{tpu_custom_call.1} parent=1 // pred_fallthru
      _
    %154 = sfence
    %v156 = vld [vmem:[#allocation2] sm:$0xf]
    %v157 = vld [vmem:[#allocation2 + $0x4] sm:$0xf]
    %v158 = vld [vmem:[%s3] sm:$0xff]
    %v159 = vld [vmem:[%s3 + $0x8] sm:$0xff]
    %v160 = vld [vmem:[%s3 + $0x10] sm:$0xff]
    %v161 = vld [vmem:[%s3 + $0x18] sm:$0xff]
    %v162 = vld [vmem:[%s2] sm:$0xff]
    %v163 = vld [vmem:[%s2 + $0x8] sm:$0xff]
    %v164 = vld [vmem:[#allocation5] sm:$0xf]
    %166 = vset.pattern.permute.xlu0 0
    %167 = vperm.xlu0 %166, %v162
    %v168 = vpop.permute.xlu0 %167
    %171 = vset.pattern.permute.xlu0 0
    %172 = vperm.xlu0 %171, %v163
    %v173 = vpop.permute.xlu0 %172
    %v176 = vperm.slane %v164, 0
    %v177 = vperm.slane %v164, 2
    %v180 = vperm.slane %v176, 0
    %v181 = vperm.slane %v177, 0
    %v182 = vmul.f32 %v168, %v180
    %v183 = vmul.f32 %v168, %v181
    %v184 = vmul.f32 %v173, %v180
    %v185 = vmul.f32 %v173, %v181
    %v188 = vunpack.c.l.b16 %v156
    %v189 = vunpack.c.l.b16 %v157
    %v190 = vpack.c.b16 %v189, %v188
    %v195 = vunpack.c.l.b16 %v158
    %v196 = vunpack.c.h.b16 %v158
    %v197 = vunpack.c.l.b16 %v159
    %v198 = vunpack.c.h.b16 %v159
    %v199 = vunpack.c.l.b16 %v160
    %v200 = vunpack.c.h.b16 %v160
    %v201 = vunpack.c.l.b16 %v161
    %v202 = vunpack.c.h.b16 %v161
    %v203 = vpack.c.b16 %v197, %v195
    %v204 = vpack.c.b16 %v198, %v196
    %v205 = vpack.c.b16 %v201, %v199
    %v206 = vpack.c.b16 %v202, %v200
    %vm211 = vcmask 261120
    %v213 = vsel %vm211, %v190, 0
    %215 = vmatpush.bf16.msra.mxu0 0
    %216 = vmatpush.bf16.msra.mxu0 0
    %217 = vmatpush.bf16.msra.mxu0 0
    %218 = vmatpush.bf16.msra.mxu0 0
    %219 = vmatpush.bf16.msra.mxu0 0
    %220 = vmatpush.bf16.msra.mxu0 0
    %221 = vmatpush.bf16.msra.mxu0 %v205
    %222 = vmatpush.bf16.msra.mxu0 %v203
    %223 = vmatmul.bf16.gmra.mxu0 %v213
    %v224 = vpop.f32.mrf.mxu0
    %v225 = vadd.f32 %v182, %v224
    %v226 = vpop.f32.mrf.mxu0
    %v227 = vadd.f32 %v184, %v226
    %228 = vdwg.mxu0
    %229 = vmatpush.bf16.msra.mxu0 0
    %230 = vmatpush.bf16.msra.mxu0 0
    %231 = vmatpush.bf16.msra.mxu0 0
    %232 = vmatpush.bf16.msra.mxu0 0
    %233 = vmatpush.bf16.msra.mxu0 0
    %234 = vmatpush.bf16.msra.mxu0 0
    %235 = vmatpush.bf16.msra.mxu0 %v206
    %236 = vmatpush.bf16.msra.mxu0 %v204
    %237 = vmatmul.bf16.gmra.mxu0 %v213
    %v238 = vpop.f32.mrf.mxu0
    %v239 = vadd.f32 %v183, %v238
    %v240 = vpop.f32.mrf.mxu0
    %v241 = vadd.f32 %v185, %v240
    %242 = vdwg.mxu0
    %243 = vset.pattern.permute.xlu0 1
    %244 = vperm.xlu0 %243, %v162
    %v245 = vpop.permute.xlu0 %244
    %247 = vset.pattern.permute.xlu0 1
    %248 = vperm.xlu0 %247, %v163
    %v249 = vpop.permute.xlu0 %248
    %v251 = vperm.slane %v164, 1
    %v252 = vperm.slane %v164, 3
    %v255 = vperm.slane %v251, 1
    %v256 = vperm.slane %v252, 1
    %v257 = vmul.f32 %v245, %v255
    %v258 = vmul.f32 %v245, %v256
    %v259 = vmul.f32 %v249, %v255
    %v260 = vmul.f32 %v249, %v256
    %v261 = vadd.f32 %v225, %v257
    %v262 = vadd.f32 %v239, %v258
    %v263 = vadd.f32 %v227, %v259
    %v264 = vadd.f32 %v241, %v260
    %v265 = vld [vmem:[#allocation7] sm:$0x3]
    %v267 = vperm.slane %v265, 0
    %v268 = vperm.slane %v265, 1
    %v271 = vadd.f32 %v261, %v267
    %v272 = vadd.f32 %v262, %v268
    %v273 = vadd.f32 %v263, %v267
    %v274 = vadd.f32 %v264, %v268
    %v275 = vmax.f32 %v271, 0.0
    %v276 = vmax.f32 %v272, 0.0
    %v277 = vmax.f32 %v273, 0.0
    %v278 = vmax.f32 %v274, 0.0
    %v279 = vpack.c.bf16 %v277, %v275
    %v280 = vpack.c.bf16 %v278, %v276
    %v281 = vld [vmem:[#allocation8] sm:$0xff]
    %v282 = vld [vmem:[#allocation8 + $0x8] sm:$0xff]
    %v283 = vld [vmem:[#allocation8 + $0x10] sm:$0xff]
    %v284 = vld [vmem:[#allocation8 + $0x18] sm:$0xff]
    %v285 = vld [vmem:[#allocation8 + $0x20] sm:$0xff]
    %v286 = vld [vmem:[#allocation8 + $0x28] sm:$0xff]
    %v287 = vld [vmem:[#allocation8 + $0x30] sm:$0xff]
    %v288 = vld [vmem:[#allocation8 + $0x38] sm:$0xff]
    %v289 = vld [vmem:[#allocation8 + $0x40] sm:$0xff]
    %v290 = vld [vmem:[#allocation8 + $0x48] sm:$0xff]
    %v291 = vld [vmem:[#allocation8 + $0x50] sm:$0xff]
    %v292 = vld [vmem:[#allocation8 + $0x58] sm:$0xff]
    %v293 = vld [vmem:[#allocation8 + $0x60] sm:$0xff]
    %v294 = vld [vmem:[#allocation8 + $0x68] sm:$0xff]
    %v295 = vld [vmem:[#allocation8 + $0x70] sm:$0xff]
    %v296 = vld [vmem:[#allocation8 + $0x78] sm:$0xff]
    %v297 = vld [vmem:[#allocation8 + $0x80] sm:$0xff]
    %v298 = vld [vmem:[#allocation8 + $0x88] sm:$0xff]
    %v299 = vld [vmem:[#allocation8 + $0x90] sm:$0xff]
    %v300 = vld [vmem:[#allocation8 + $0x98] sm:$0xff]
    %v301 = vld [vmem:[#allocation8 + $0xa0] sm:$0xff]
    %v302 = vld [vmem:[#allocation8 + $0xa8] sm:$0xff]
    %v303 = vld [vmem:[#allocation8 + $0xb0] sm:$0xff]
    %v304 = vld [vmem:[#allocation8 + $0xb8] sm:$0xff]
    %v305 = vld [vmem:[#allocation8 + $0xc0] sm:$0xff]
    %v306 = vld [vmem:[#allocation8 + $0xc8] sm:$0xff]
    %v307 = vld [vmem:[#allocation8 + $0xd0] sm:$0xff]
    %v308 = vld [vmem:[#allocation8 + $0xd8] sm:$0xff]
    %v309 = vld [vmem:[#allocation8 + $0xe0] sm:$0xff]
    %v310 = vld [vmem:[#allocation8 + $0xe8] sm:$0xff]
    %v311 = vld [vmem:[#allocation8 + $0xf0] sm:$0xff]
    %v312 = vld [vmem:[#allocation8 + $0xf8] sm:$0xff]
    %v313 = vld [vmem:[#allocation10] sm:$0x3]
    %v315 = vperm.slane %v313, 0
    %v316 = vperm.slane %v313, 1
    %v351 = vunpack.c.l.b16 %v281
    %v352 = vunpack.c.h.b16 %v281
    %v353 = vunpack.c.l.b16 %v282
    %v354 = vunpack.c.h.b16 %v282
    %v355 = vunpack.c.l.b16 %v283
    %v356 = vunpack.c.h.b16 %v283
    %v357 = vunpack.c.l.b16 %v284
    %v358 = vunpack.c.h.b16 %v284
    %v359 = vunpack.c.l.b16 %v285
    %v360 = vunpack.c.h.b16 %v285
    %v361 = vunpack.c.l.b16 %v286
    %v362 = vunpack.c.h.b16 %v286
    %v363 = vunpack.c.l.b16 %v287
    %v364 = vunpack.c.h.b16 %v287
    %v365 = vunpack.c.l.b16 %v288
    %v366 = vunpack.c.h.b16 %v288
    %v367 = vunpack.c.l.b16 %v289
    %v368 = vunpack.c.h.b16 %v289
    %v369 = vunpack.c.l.b16 %v290
    %v370 = vunpack.c.h.b16 %v290
    %v371 = vunpack.c.l.b16 %v291
    %v372 = vunpack.c.h.b16 %v291
    %v373 = vunpack.c.l.b16 %v292
    %v374 = vunpack.c.h.b16 %v292
    %v375 = vunpack.c.l.b16 %v293
    %v376 = vunpack.c.h.b16 %v293
    %v377 = vunpack.c.l.b16 %v294
    %v378 = vunpack.c.h.b16 %v294
    %v379 = vunpack.c.l.b16 %v295
    %v380 = vunpack.c.h.b16 %v295
    %v381 = vunpack.c.l.b16 %v296
    %v382 = vunpack.c.h.b16 %v296
    %v383 = vunpack.c.l.b16 %v297
    %v384 = vunpack.c.h.b16 %v297
    %v385 = vunpack.c.l.b16 %v298
    %v386 = vunpack.c.h.b16 %v298
    %v387 = vunpack.c.l.b16 %v299
    %v388 = vunpack.c.h.b16 %v299
    %v389 = vunpack.c.l.b16 %v300
    %v390 = vunpack.c.h.b16 %v300
    %v391 = vunpack.c.l.b16 %v301
    %v392 = vunpack.c.h.b16 %v301
    %v393 = vunpack.c.l.b16 %v302
    %v394 = vunpack.c.h.b16 %v302
    %v395 = vunpack.c.l.b16 %v303
    %v396 = vunpack.c.h.b16 %v303
    %v397 = vunpack.c.l.b16 %v304
    %v398 = vunpack.c.h.b16 %v304
    %v399 = vunpack.c.l.b16 %v305
    %v400 = vunpack.c.h.b16 %v305
    %v401 = vunpack.c.l.b16 %v306
    %v402 = vunpack.c.h.b16 %v306
    %v403 = vunpack.c.l.b16 %v307
    %v404 = vunpack.c.h.b16 %v307
    %v405 = vunpack.c.l.b16 %v308
    %v406 = vunpack.c.h.b16 %v308
    %v407 = vunpack.c.l.b16 %v309
    %v408 = vunpack.c.h.b16 %v309
    %v409 = vunpack.c.l.b16 %v310
    %v410 = vunpack.c.h.b16 %v310
    %v411 = vunpack.c.l.b16 %v311
    %v412 = vunpack.c.h.b16 %v311
    %v413 = vunpack.c.l.b16 %v312
    %v414 = vunpack.c.h.b16 %v312
    %v415 = vpack.c.b16 %v353, %v351
    %v416 = vpack.c.b16 %v354, %v352
    %v417 = vpack.c.b16 %v357, %v355
    %v418 = vpack.c.b16 %v358, %v356
    %v419 = vpack.c.b16 %v361, %v359
    %v420 = vpack.c.b16 %v362, %v360
    %v421 = vpack.c.b16 %v365, %v363
    %v422 = vpack.c.b16 %v366, %v364
    %v423 = vpack.c.b16 %v369, %v367
    %v424 = vpack.c.b16 %v370, %v368
    %v425 = vpack.c.b16 %v373, %v371
    %v426 = vpack.c.b16 %v374, %v372
    %v427 = vpack.c.b16 %v377, %v375
    %v428 = vpack.c.b16 %v378, %v376
    %v429 = vpack.c.b16 %v381, %v379
    %v430 = vpack.c.b16 %v382, %v380
    %v431 = vpack.c.b16 %v385, %v383
    %v432 = vpack.c.b16 %v386, %v384
    %v433 = vpack.c.b16 %v389, %v387
    %v434 = vpack.c.b16 %v390, %v388
    %v435 = vpack.c.b16 %v393, %v391
    %v436 = vpack.c.b16 %v394, %v392
    %v437 = vpack.c.b16 %v397, %v395
    %v438 = vpack.c.b16 %v398, %v396
    %v439 = vpack.c.b16 %v401, %v399
    %v440 = vpack.c.b16 %v402, %v400
    %v441 = vpack.c.b16 %v405, %v403
    %v442 = vpack.c.b16 %v406, %v404
    %v443 = vpack.c.b16 %v409, %v407
    %v444 = vpack.c.b16 %v410, %v408
    %v445 = vpack.c.b16 %v413, %v411
    %v446 = vpack.c.b16 %v414, %v412
    %479 = vmatpush.bf16.msra.mxu0 %v429
    %480 = vmatpush.bf16.msra.mxu0 %v427
    %481 = vmatpush.bf16.msra.mxu0 %v425
    %482 = vmatpush.bf16.msra.mxu0 %v423
    %483 = vmatpush.bf16.msra.mxu0 %v421
    %484 = vmatpush.bf16.msra.mxu0 %v419
    %485 = vmatpush.bf16.msra.mxu0 %v417
    %486 = vmatpush.bf16.msra.mxu0 %v415
    %487 = vmatmul.bf16.gmra.mxu0 %v279
    %v488 = vpop.f32.mrf.mxu0
    %v489 = vadd.f32 %v315, %v488
    %v490 = vpop.f32.mrf.mxu0
    %v491 = vadd.f32 %v315, %v490
    %492 = vdwg.mxu0
    %493 = vmatpush.bf16.msra.mxu0 %v445
    %494 = vmatpush.bf16.msra.mxu0 %v443
    %495 = vmatpush.bf16.msra.mxu0 %v441
    %496 = vmatpush.bf16.msra.mxu0 %v439
    %497 = vmatpush.bf16.msra.mxu0 %v437
    %498 = vmatpush.bf16.msra.mxu0 %v435
    %499 = vmatpush.bf16.msra.mxu0 %v433
    %500 = vmatpush.bf16.msra.mxu0 %v431
    %501 = vmatmul.bf16.gmra.mxu0 %v280
    %v502 = vpop.f32.mrf.mxu0
    %v503 = vadd.f32 %v489, %v502
    %v504 = vpop.f32.mrf.mxu0
    %v505 = vadd.f32 %v491, %v504
    %506 = vdwg.mxu0
    %507 = vmatpush.bf16.msra.mxu0 %v430
    %508 = vmatpush.bf16.msra.mxu0 %v428
    %509 = vmatpush.bf16.msra.mxu0 %v426
    %510 = vmatpush.bf16.msra.mxu0 %v424
    %511 = vmatpush.bf16.msra.mxu0 %v422
    %512 = vmatpush.bf16.msra.mxu0 %v420
    %513 = vmatpush.bf16.msra.mxu0 %v418
    %514 = vmatpush.bf16.msra.mxu0 %v416
    %515 = vmatmul.bf16.gmra.mxu0 %v279
    %v516 = vpop.f32.mrf.mxu0
    %v517 = vadd.f32 %v316, %v516
    %v518 = vpop.f32.mrf.mxu0
    %v519 = vadd.f32 %v316, %v518
    %520 = vdwg.mxu0
    %521 = vmatpush.bf16.msra.mxu0 %v446
    %522 = vmatpush.bf16.msra.mxu0 %v444
    %523 = vmatpush.bf16.msra.mxu0 %v442
    %524 = vmatpush.bf16.msra.mxu0 %v440
    %525 = vmatpush.bf16.msra.mxu0 %v438
    %526 = vmatpush.bf16.msra.mxu0 %v436
    %527 = vmatpush.bf16.msra.mxu0 %v434
    %528 = vmatpush.bf16.msra.mxu0 %v432
    %529 = vmatmul.bf16.gmra.mxu0 %v280
    %v530 = vpop.f32.mrf.mxu0
    %v531 = vadd.f32 %v517, %v530
    %v532 = vpop.f32.mrf.mxu0
    %v533 = vadd.f32 %v519, %v532
    %534 = vdwg.mxu0
    %v535 = vmax.f32 %v503, 0.0
    %v536 = vmax.f32 %v531, 0.0
    %v537 = vmax.f32 %v505, 0.0
    %v538 = vmax.f32 %v533, 0.0
    %v539 = vpack.c.bf16 %v537, %v535
    %v540 = vpack.c.bf16 %v538, %v536
    %v541 = vld [vmem:[#allocation11] sm:$0xff]
    %v542 = vld [vmem:[#allocation11 + $0x8] sm:$0xff]
    %v543 = vld [vmem:[#allocation11 + $0x10] sm:$0xff]
    %v544 = vld [vmem:[#allocation11 + $0x18] sm:$0xff]
    %v545 = vld [vmem:[#allocation11 + $0x20] sm:$0xff]
    %v546 = vld [vmem:[#allocation11 + $0x28] sm:$0xff]
    %v547 = vld [vmem:[#allocation11 + $0x30] sm:$0xff]
    %v548 = vld [vmem:[#allocation11 + $0x38] sm:$0xff]
    %v549 = vld [vmem:[#allocation11 + $0x40] sm:$0xff]
    %v550 = vld [vmem:[#allocation11 + $0x48] sm:$0xff]
    %v551 = vld [vmem:[#allocation11 + $0x50] sm:$0xff]
    %v552 = vld [vmem:[#allocation11 + $0x58] sm:$0xff]
    %v553 = vld [vmem:[#allocation11 + $0x60] sm:$0xff]
    %v554 = vld [vmem:[#allocation11 + $0x68] sm:$0xff]
    %v555 = vld [vmem:[#allocation11 + $0x70] sm:$0xff]
    %v556 = vld [vmem:[#allocation11 + $0x78] sm:$0xff]
    %v557 = vld [vmem:[#allocation11 + $0x80] sm:$0xff]
    %v558 = vld [vmem:[#allocation11 + $0x88] sm:$0xff]
    %v559 = vld [vmem:[#allocation11 + $0x90] sm:$0xff]
    %v560 = vld [vmem:[#allocation11 + $0x98] sm:$0xff]
    %v561 = vld [vmem:[#allocation11 + $0xa0] sm:$0xff]
    %v562 = vld [vmem:[#allocation11 + $0xa8] sm:$0xff]
    %v563 = vld [vmem:[#allocation11 + $0xb0] sm:$0xff]
    %v564 = vld [vmem:[#allocation11 + $0xb8] sm:$0xff]
    %v565 = vld [vmem:[#allocation11 + $0xc0] sm:$0xff]
    %v566 = vld [vmem:[#allocation11 + $0xc8] sm:$0xff]
    %v567 = vld [vmem:[#allocation11 + $0xd0] sm:$0xff]
    %v568 = vld [vmem:[#allocation11 + $0xd8] sm:$0xff]
    %v569 = vld [vmem:[#allocation11 + $0xe0] sm:$0xff]
    %v570 = vld [vmem:[#allocation11 + $0xe8] sm:$0xff]
    %v571 = vld [vmem:[#allocation11 + $0xf0] sm:$0xff]
    %v572 = vld [vmem:[#allocation11 + $0xf8] sm:$0xff]
    %v573 = vld [vmem:[#allocation11 + $0x100] sm:$0xff]
    %v574 = vld [vmem:[#allocation11 + $0x108] sm:$0xff]
    %v575 = vld [vmem:[#allocation11 + $0x110] sm:$0xff]
    %v576 = vld [vmem:[#allocation11 + $0x118] sm:$0xff]
    %v577 = vld [vmem:[#allocation11 + $0x120] sm:$0xff]
    %v578 = vld [vmem:[#allocation11 + $0x128] sm:$0xff]
    %v579 = vld [vmem:[#allocation11 + $0x130] sm:$0xff]
    %v580 = vld [vmem:[#allocation11 + $0x138] sm:$0xff]
    %v581 = vld [vmem:[#allocation11 + $0x140] sm:$0xff]
    %v582 = vld [vmem:[#allocation11 + $0x148] sm:$0xff]
    %v583 = vld [vmem:[#allocation11 + $0x150] sm:$0xff]
    %v584 = vld [vmem:[#allocation11 + $0x158] sm:$0xff]
    %v585 = vld [vmem:[#allocation11 + $0x160] sm:$0xff]
    %v586 = vld [vmem:[#allocation11 + $0x168] sm:$0xff]
    %v587 = vld [vmem:[#allocation11 + $0x170] sm:$0xff]
    %v588 = vld [vmem:[#allocation11 + $0x178] sm:$0xff]
    %v589 = vld [vmem:[#allocation11 + $0x180] sm:$0xff]
    %v590 = vld [vmem:[#allocation11 + $0x188] sm:$0xff]
    %v591 = vld [vmem:[#allocation11 + $0x190] sm:$0xff]
    %v592 = vld [vmem:[#allocation11 + $0x198] sm:$0xff]
    %v593 = vld [vmem:[#allocation11 + $0x1a0] sm:$0xff]
    %v594 = vld [vmem:[#allocation11 + $0x1a8] sm:$0xff]
    %v595 = vld [vmem:[#allocation11 + $0x1b0] sm:$0xff]
    %v596 = vld [vmem:[#allocation11 + $0x1b8] sm:$0xff]
    %v597 = vld [vmem:[#allocation11 + $0x1c0] sm:$0xff]
    %v598 = vld [vmem:[#allocation11 + $0x1c8] sm:$0xff]
    %v599 = vld [vmem:[#allocation11 + $0x1d0] sm:$0xff]
    %v600 = vld [vmem:[#allocation11 + $0x1d8] sm:$0xff]
    %v601 = vld [vmem:[#allocation11 + $0x1e0] sm:$0xff]
    %v602 = vld [vmem:[#allocation11 + $0x1e8] sm:$0xff]
    %v603 = vld [vmem:[#allocation11 + $0x1f0] sm:$0xff]
    %v604 = vld [vmem:[#allocation11 + $0x1f8] sm:$0xff]
    %v605 = vld [vmem:[#allocation11 + $0x200] sm:$0xff]
    %v606 = vld [vmem:[#allocation11 + $0x208] sm:$0xff]
    %v607 = vld [vmem:[#allocation11 + $0x210] sm:$0xff]
    %v608 = vld [vmem:[#allocation11 + $0x218] sm:$0xff]
    %v609 = vld [vmem:[#allocation11 + $0x220] sm:$0xff]
    %v610 = vld [vmem:[#allocation11 + $0x228] sm:$0xff]
    %v611 = vld [vmem:[#allocation11 + $0x230] sm:$0xff]
    %v612 = vld [vmem:[#allocation11 + $0x238] sm:$0xff]
    %v613 = vld [vmem:[#allocation11 + $0x240] sm:$0xff]
    %v614 = vld [vmem:[#allocation11 + $0x248] sm:$0xff]
    %v615 = vld [vmem:[#allocation11 + $0x250] sm:$0xff]
    %v616 = vld [vmem:[#allocation11 + $0x258] sm:$0xff]
    %v617 = vld [vmem:[#allocation11 + $0x260] sm:$0xff]
    %v618 = vld [vmem:[#allocation11 + $0x268] sm:$0xff]
    %v619 = vld [vmem:[#allocation11 + $0x270] sm:$0xff]
    %v620 = vld [vmem:[#allocation11 + $0x278] sm:$0xff]
    %v621 = vld [vmem:[#allocation11 + $0x280] sm:$0xff]
    %v622 = vld [vmem:[#allocation11 + $0x288] sm:$0xff]
    %v623 = vld [vmem:[#allocation11 + $0x290] sm:$0xff]
    %v624 = vld [vmem:[#allocation11 + $0x298] sm:$0xff]
    %v625 = vld [vmem:[#allocation11 + $0x2a0] sm:$0xff]
    %v626 = vld [vmem:[#allocation11 + $0x2a8] sm:$0xff]
    %v627 = vld [vmem:[#allocation11 + $0x2b0] sm:$0xff]
    %v628 = vld [vmem:[#allocation11 + $0x2b8] sm:$0xff]
    %v629 = vld [vmem:[#allocation11 + $0x2c0] sm:$0xff]
    %v630 = vld [vmem:[#allocation11 + $0x2c8] sm:$0xff]
    %v631 = vld [vmem:[#allocation11 + $0x2d0] sm:$0xff]
    %v632 = vld [vmem:[#allocation11 + $0x2d8] sm:$0xff]
    %v633 = vld [vmem:[#allocation11 + $0x2e0] sm:$0xff]
    %v634 = vld [vmem:[#allocation11 + $0x2e8] sm:$0xff]
    %v635 = vld [vmem:[#allocation11 + $0x2f0] sm:$0xff]
    %v636 = vld [vmem:[#allocation11 + $0x2f8] sm:$0xff]
    %v637 = vld [vmem:[%s9] sm:$0x3f]
    %v639 = vperm.slane %v637, 0
    %v640 = vperm.slane %v637, 1
    %v641 = vperm.slane %v637, 2
    %v642 = vperm.slane %v637, 3
    %v643 = vperm.slane %v637, 4
    %v644 = vperm.slane %v637, 5
    %v747 = vunpack.c.l.b16 %v541
    %v748 = vunpack.c.h.b16 %v541
    %v749 = vunpack.c.l.b16 %v542
    %v750 = vunpack.c.h.b16 %v542
    %v751 = vunpack.c.l.b16 %v543
    %v752 = vunpack.c.h.b16 %v543
    %v753 = vunpack.c.l.b16 %v544
    %v754 = vunpack.c.h.b16 %v544
    %v755 = vunpack.c.l.b16 %v545
    %v756 = vunpack.c.h.b16 %v545
    %v757 = vunpack.c.l.b16 %v546
    %v758 = vunpack.c.h.b16 %v546
    %v759 = vunpack.c.l.b16 %v547
    %v760 = vunpack.c.h.b16 %v547
    %v761 = vunpack.c.l.b16 %v548
    %v762 = vunpack.c.h.b16 %v548
    %v763 = vunpack.c.l.b16 %v549
    %v764 = vunpack.c.h.b16 %v549
    %v765 = vunpack.c.l.b16 %v550
    %v766 = vunpack.c.h.b16 %v550
    %v767 = vunpack.c.l.b16 %v551
    %v768 = vunpack.c.h.b16 %v551
    %v769 = vunpack.c.l.b16 %v552
    %v770 = vunpack.c.h.b16 %v552
    %v771 = vunpack.c.l.b16 %v553
    %v772 = vunpack.c.h.b16 %v553
    %v773 = vunpack.c.l.b16 %v554
    %v774 = vunpack.c.h.b16 %v554
    %v775 = vunpack.c.l.b16 %v555
    %v776 = vunpack.c.h.b16 %v555
    %v777 = vunpack.c.l.b16 %v556
    %v778 = vunpack.c.h.b16 %v556
    %v779 = vunpack.c.l.b16 %v557
    %v780 = vunpack.c.h.b16 %v557
    %v781 = vunpack.c.l.b16 %v558
    %v782 = vunpack.c.h.b16 %v558
    %v783 = vunpack.c.l.b16 %v559
    %v784 = vunpack.c.h.b16 %v559
    %v785 = vunpack.c.l.b16 %v560
    %v786 = vunpack.c.h.b16 %v560
    %v787 = vunpack.c.l.b16 %v561
    %v788 = vunpack.c.h.b16 %v561
    %v789 = vunpack.c.l.b16 %v562
    %v790 = vunpack.c.h.b16 %v562
    %v791 = vunpack.c.l.b16 %v563
    %v792 = vunpack.c.h.b16 %v563
    %v793 = vunpack.c.l.b16 %v564
    %v794 = vunpack.c.h.b16 %v564
    %v795 = vunpack.c.l.b16 %v565
    %v796 = vunpack.c.h.b16 %v565
    %v797 = vunpack.c.l.b16 %v566
    %v798 = vunpack.c.h.b16 %v566
    %v799 = vunpack.c.l.b16 %v567
    %v800 = vunpack.c.h.b16 %v567
    %v801 = vunpack.c.l.b16 %v568
    %v802 = vunpack.c.h.b16 %v568
    %v803 = vunpack.c.l.b16 %v569
    %v804 = vunpack.c.h.b16 %v569
    %v805 = vunpack.c.l.b16 %v570
    %v806 = vunpack.c.h.b16 %v570
    %v807 = vunpack.c.l.b16 %v571
    %v808 = vunpack.c.h.b16 %v571
    %v809 = vunpack.c.l.b16 %v572
    %v810 = vunpack.c.h.b16 %v572
    %v811 = vunpack.c.l.b16 %v573
    %v812 = vunpack.c.h.b16 %v573
    %v813 = vunpack.c.l.b16 %v574
    %v814 = vunpack.c.h.b16 %v574
    %v815 = vunpack.c.l.b16 %v575
    %v816 = vunpack.c.h.b16 %v575
    %v817 = vunpack.c.l.b16 %v576
    %v818 = vunpack.c.h.b16 %v576
    %v819 = vunpack.c.l.b16 %v577
    %v820 = vunpack.c.h.b16 %v577
    %v821 = vunpack.c.l.b16 %v578
    %v822 = vunpack.c.h.b16 %v578
    %v823 = vunpack.c.l.b16 %v579
    %v824 = vunpack.c.h.b16 %v579
    %v825 = vunpack.c.l.b16 %v580
    %v826 = vunpack.c.h.b16 %v580
    %v827 = vunpack.c.l.b16 %v581
    %v828 = vunpack.c.h.b16 %v581
    %v829 = vunpack.c.l.b16 %v582
    %v830 = vunpack.c.h.b16 %v582
    %v831 = vunpack.c.l.b16 %v583
    %v832 = vunpack.c.h.b16 %v583
    %v833 = vunpack.c.l.b16 %v584
    %v834 = vunpack.c.h.b16 %v584
    %v835 = vunpack.c.l.b16 %v585
    %v836 = vunpack.c.h.b16 %v585
    %v837 = vunpack.c.l.b16 %v586
    %v838 = vunpack.c.h.b16 %v586
    %v839 = vunpack.c.l.b16 %v587
    %v840 = vunpack.c.h.b16 %v587
    %v841 = vunpack.c.l.b16 %v588
    %v842 = vunpack.c.h.b16 %v588
    %v843 = vunpack.c.l.b16 %v589
    %v844 = vunpack.c.h.b16 %v589
    %v845 = vunpack.c.l.b16 %v590
    %v846 = vunpack.c.h.b16 %v590
    %v847 = vunpack.c.l.b16 %v591
    %v848 = vunpack.c.h.b16 %v591
    %v849 = vunpack.c.l.b16 %v592
    %v850 = vunpack.c.h.b16 %v592
    %v851 = vunpack.c.l.b16 %v593
    %v852 = vunpack.c.h.b16 %v593
    %v853 = vunpack.c.l.b16 %v594
    %v854 = vunpack.c.h.b16 %v594
    %v855 = vunpack.c.l.b16 %v595
    %v856 = vunpack.c.h.b16 %v595
    %v857 = vunpack.c.l.b16 %v596
    %v858 = vunpack.c.h.b16 %v596
    %v859 = vunpack.c.l.b16 %v597
    %v860 = vunpack.c.h.b16 %v597
    %v861 = vunpack.c.l.b16 %v598
    %v862 = vunpack.c.h.b16 %v598
    %v863 = vunpack.c.l.b16 %v599
    %v864 = vunpack.c.h.b16 %v599
    %v865 = vunpack.c.l.b16 %v600
    %v866 = vunpack.c.h.b16 %v600
    %v867 = vunpack.c.l.b16 %v601
    %v868 = vunpack.c.h.b16 %v601
    %v869 = vunpack.c.l.b16 %v602
    %v870 = vunpack.c.h.b16 %v602
    %v871 = vunpack.c.l.b16 %v603
    %v872 = vunpack.c.h.b16 %v603
    %v873 = vunpack.c.l.b16 %v604
    %v874 = vunpack.c.h.b16 %v604
    %v875 = vunpack.c.l.b16 %v605
    %v876 = vunpack.c.h.b16 %v605
    %v877 = vunpack.c.l.b16 %v606
    %v878 = vunpack.c.h.b16 %v606
    %v879 = vunpack.c.l.b16 %v607
    %v880 = vunpack.c.h.b16 %v607
    %v881 = vunpack.c.l.b16 %v608
    %v882 = vunpack.c.h.b16 %v608
    %v883 = vunpack.c.l.b16 %v609
    %v884 = vunpack.c.h.b16 %v609
    %v885 = vunpack.c.l.b16 %v610
    %v886 = vunpack.c.h.b16 %v610
    %v887 = vunpack.c.l.b16 %v611
    %v888 = vunpack.c.h.b16 %v611
    %v889 = vunpack.c.l.b16 %v612
    %v890 = vunpack.c.h.b16 %v612
    %v891 = vunpack.c.l.b16 %v613
    %v892 = vunpack.c.h.b16 %v613
    %v893 = vunpack.c.l.b16 %v614
    %v894 = vunpack.c.h.b16 %v614
    %v895 = vunpack.c.l.b16 %v615
    %v896 = vunpack.c.h.b16 %v615
    %v897 = vunpack.c.l.b16 %v616
    %v898 = vunpack.c.h.b16 %v616
    %v899 = vunpack.c.l.b16 %v617
    %v900 = vunpack.c.h.b16 %v617
    %v901 = vunpack.c.l.b16 %v618
    %v902 = vunpack.c.h.b16 %v618
    %v903 = vunpack.c.l.b16 %v619
    %v904 = vunpack.c.h.b16 %v619
    %v905 = vunpack.c.l.b16 %v620
    %v906 = vunpack.c.h.b16 %v620
    %v907 = vunpack.c.l.b16 %v621
    %v908 = vunpack.c.h.b16 %v621
    %v909 = vunpack.c.l.b16 %v622
    %v910 = vunpack.c.h.b16 %v622
    %v911 = vunpack.c.l.b16 %v623
    %v912 = vunpack.c.h.b16 %v623
    %v913 = vunpack.c.l.b16 %v624
    %v914 = vunpack.c.h.b16 %v624
    %v915 = vunpack.c.l.b16 %v625
    %v916 = vunpack.c.h.b16 %v625
    %v917 = vunpack.c.l.b16 %v626
    %v918 = vunpack.c.h.b16 %v626
    %v919 = vunpack.c.l.b16 %v627
    %v920 = vunpack.c.h.b16 %v627
    %v921 = vunpack.c.l.b16 %v628
    %v922 = vunpack.c.h.b16 %v628
    %v923 = vunpack.c.l.b16 %v629
    %v924 = vunpack.c.h.b16 %v629
    %v925 = vunpack.c.l.b16 %v630
    %v926 = vunpack.c.h.b16 %v630
    %v927 = vunpack.c.l.b16 %v631
    %v928 = vunpack.c.h.b16 %v631
    %v929 = vunpack.c.l.b16 %v632
    %v930 = vunpack.c.h.b16 %v632
    %v931 = vunpack.c.l.b16 %v633
    %v932 = vunpack.c.h.b16 %v633
    %v933 = vunpack.c.l.b16 %v634
    %v934 = vunpack.c.h.b16 %v634
    %v935 = vunpack.c.l.b16 %v635
    %v936 = vunpack.c.h.b16 %v635
    %v937 = vunpack.c.l.b16 %v636
    %v938 = vunpack.c.h.b16 %v636
    %v939 = vpack.c.b16 %v753, %v747
    %v940 = vpack.c.b16 %v754, %v748
    %v941 = vpack.c.b16 %v755, %v749
    %v942 = vpack.c.b16 %v756, %v750
    %v943 = vpack.c.b16 %v757, %v751
    %v944 = vpack.c.b16 %v758, %v752
    %v945 = vpack.c.b16 %v765, %v759
    %v946 = vpack.c.b16 %v766, %v760
    %v947 = vpack.c.b16 %v767, %v761
    %v948 = vpack.c.b16 %v768, %v762
    %v949 = vpack.c.b16 %v769, %v763
    %v950 = vpack.c.b16 %v770, %v764
    %v951 = vpack.c.b16 %v777, %v771
    %v952 = vpack.c.b16 %v778, %v772
    %v953 = vpack.c.b16 %v779, %v773
    %v954 = vpack.c.b16 %v780, %v774
    %v955 = vpack.c.b16 %v781, %v775
    %v956 = vpack.c.b16 %v782, %v776
    %v957 = vpack.c.b16 %v789, %v783
    %v958 = vpack.c.b16 %v790, %v784
    %v959 = vpack.c.b16 %v791, %v785
    %v960 = vpack.c.b16 %v792, %v786
    %v961 = vpack.c.b16 %v793, %v787
    %v962 = vpack.c.b16 %v794, %v788
    %v963 = vpack.c.b16 %v801, %v795
    %v964 = vpack.c.b16 %v802, %v796
    %v965 = vpack.c.b16 %v803, %v797
    %v966 = vpack.c.b16 %v804, %v798
    %v967 = vpack.c.b16 %v805, %v799
    %v968 = vpack.c.b16 %v806, %v800
    %v969 = vpack.c.b16 %v813, %v807
    %v970 = vpack.c.b16 %v814, %v808
    %v971 = vpack.c.b16 %v815, %v809
    %v972 = vpack.c.b16 %v816, %v810
    %v973 = vpack.c.b16 %v817, %v811
    %v974 = vpack.c.b16 %v818, %v812
    %v975 = vpack.c.b16 %v825, %v819
    %v976 = vpack.c.b16 %v826, %v820
    %v977 = vpack.c.b16 %v827, %v821
    %v978 = vpack.c.b16 %v828, %v822
    %v979 = vpack.c.b16 %v829, %v823
    %v980 = vpack.c.b16 %v830, %v824
    %v981 = vpack.c.b16 %v837, %v831
    %v982 = vpack.c.b16 %v838, %v832
    %v983 = vpack.c.b16 %v839, %v833
    %v984 = vpack.c.b16 %v840, %v834
    %v985 = vpack.c.b16 %v841, %v835
    %v986 = vpack.c.b16 %v842, %v836
    %v987 = vpack.c.b16 %v849, %v843
    %v988 = vpack.c.b16 %v850, %v844
    %v989 = vpack.c.b16 %v851, %v845
    %v990 = vpack.c.b16 %v852, %v846
    %v991 = vpack.c.b16 %v853, %v847
    %v992 = vpack.c.b16 %v854, %v848
    %v993 = vpack.c.b16 %v861, %v855
    %v994 = vpack.c.b16 %v862, %v856
    %v995 = vpack.c.b16 %v863, %v857
    %v996 = vpack.c.b16 %v864, %v858
    %v997 = vpack.c.b16 %v865, %v859
    %v998 = vpack.c.b16 %v866, %v860
    %v999 = vpack.c.b16 %v873, %v867
    %v1000 = vpack.c.b16 %v874, %v868
    %v1001 = vpack.c.b16 %v875, %v869
    %v1002 = vpack.c.b16 %v876, %v870
    %v1003 = vpack.c.b16 %v877, %v871
    %v1004 = vpack.c.b16 %v878, %v872
    %v1005 = vpack.c.b16 %v885, %v879
    %v1006 = vpack.c.b16 %v886, %v880
    %v1007 = vpack.c.b16 %v887, %v881
    %v1008 = vpack.c.b16 %v888, %v882
    %v1009 = vpack.c.b16 %v889, %v883
    %v1010 = vpack.c.b16 %v890, %v884
    %v1011 = vpack.c.b16 %v897, %v891
    %v1012 = vpack.c.b16 %v898, %v892
    %v1013 = vpack.c.b16 %v899, %v893
    %v1014 = vpack.c.b16 %v900, %v894
    %v1015 = vpack.c.b16 %v901, %v895
    %v1016 = vpack.c.b16 %v902, %v896
    %v1017 = vpack.c.b16 %v909, %v903
    %v1018 = vpack.c.b16 %v910, %v904
    %v1019 = vpack.c.b16 %v911, %v905
    %v1020 = vpack.c.b16 %v912, %v906
    %v1021 = vpack.c.b16 %v913, %v907
    %v1022 = vpack.c.b16 %v914, %v908
    %v1023 = vpack.c.b16 %v921, %v915
    %v1024 = vpack.c.b16 %v922, %v916
    %v1025 = vpack.c.b16 %v923, %v917
    %v1026 = vpack.c.b16 %v924, %v918
    %v1027 = vpack.c.b16 %v925, %v919
    %v1028 = vpack.c.b16 %v926, %v920
    %v1029 = vpack.c.b16 %v933, %v927
    %v1030 = vpack.c.b16 %v934, %v928
    %v1031 = vpack.c.b16 %v935, %v929
    %v1032 = vpack.c.b16 %v936, %v930
    %v1033 = vpack.c.b16 %v937, %v931
    %v1034 = vpack.c.b16 %v938, %v932
    %1131 = vmatpush.bf16.msra.mxu0 %v981
    %1132 = vmatpush.bf16.msra.mxu0 %v975
    %1133 = vmatpush.bf16.msra.mxu0 %v969
    %1134 = vmatpush.bf16.msra.mxu0 %v963
    %1135 = vmatpush.bf16.msra.mxu0 %v957
    %1136 = vmatpush.bf16.msra.mxu0 %v951
    %1137 = vmatpush.bf16.msra.mxu0 %v945
    %1138 = vmatpush.bf16.msra.mxu0 %v939
    %1139 = vmatmul.bf16.gmra.mxu0 %v539
    %v1140 = vpop.f32.mrf.mxu0
    %v1141 = vadd.f32 %v639, %v1140
    %v1142 = vpop.f32.mrf.mxu0
    %v1143 = vadd.f32 %v639, %v1142
    %1144 = vdwg.mxu0
    %1145 = vmatpush.bf16.msra.mxu0 %v1029
    %1146 = vmatpush.bf16.msra.mxu0 %v1023
    %1147 = vmatpush.bf16.msra.mxu0 %v1017
    %1148 = vmatpush.bf16.msra.mxu0 %v1011
    %1149 = vmatpush.bf16.msra.mxu0 %v1005
    %1150 = vmatpush.bf16.msra.mxu0 %v999
    %1151 = vmatpush.bf16.msra.mxu0 %v993
    %1152 = vmatpush.bf16.msra.mxu0 %v987
    %1153 = vmatmul.bf16.gmra.mxu0 %v540
    %v1154 = vpop.f32.mrf.mxu0
    %v1155 = vadd.f32 %v1141, %v1154
    %v1156 = vpop.f32.mrf.mxu0
    %v1157 = vadd.f32 %v1143, %v1156
    %1158 = vdwg.mxu0
    %1159 = vmatpush.bf16.msra.mxu0 %v982
    %1160 = vmatpush.bf16.msra.mxu0 %v976
    %1161 = vmatpush.bf16.msra.mxu0 %v970
    %1162 = vmatpush.bf16.msra.mxu0 %v964
    %1163 = vmatpush.bf16.msra.mxu0 %v958
    %1164 = vmatpush.bf16.msra.mxu0 %v952
    %1165 = vmatpush.bf16.msra.mxu0 %v946
    %1166 = vmatpush.bf16.msra.mxu0 %v940
    %1167 = vmatmul.bf16.gmra.mxu0 %v539
    %v1168 = vpop.f32.mrf.mxu0
    %v1169 = vadd.f32 %v640, %v1168
    %v1170 = vpop.f32.mrf.mxu0
    %v1171 = vadd.f32 %v640, %v1170
    %1172 = vdwg.mxu0
    %1173 = vmatpush.bf16.msra.mxu0 %v1030
    %1174 = vmatpush.bf16.msra.mxu0 %v1024
    %1175 = vmatpush.bf16.msra.mxu0 %v1018
    %1176 = vmatpush.bf16.msra.mxu0 %v1012
    %1177 = vmatpush.bf16.msra.mxu0 %v1006
    %1178 = vmatpush.bf16.msra.mxu0 %v1000
    %1179 = vmatpush.bf16.msra.mxu0 %v994
    %1180 = vmatpush.bf16.msra.mxu0 %v988
    %1181 = vmatmul.bf16.gmra.mxu0 %v540
    %v1182 = vpop.f32.mrf.mxu0
    %v1183 = vadd.f32 %v1169, %v1182
    %v1184 = vpop.f32.mrf.mxu0
    %v1185 = vadd.f32 %v1171, %v1184
    %1186 = vdwg.mxu0
    %1187 = vmatpush.bf16.msra.mxu0 %v983
    %1188 = vmatpush.bf16.msra.mxu0 %v977
    %1189 = vmatpush.bf16.msra.mxu0 %v971
    %1190 = vmatpush.bf16.msra.mxu0 %v965
    %1191 = vmatpush.bf16.msra.mxu0 %v959
    %1192 = vmatpush.bf16.msra.mxu0 %v953
    %1193 = vmatpush.bf16.msra.mxu0 %v947
    %1194 = vmatpush.bf16.msra.mxu0 %v941
    %1195 = vmatmul.bf16.gmra.mxu0 %v539
    %v1196 = vpop.f32.mrf.mxu0
    %v1197 = vadd.f32 %v641, %v1196
    %v1198 = vpop.f32.mrf.mxu0
    %v1199 = vadd.f32 %v641, %v1198
    %1200 = vdwg.mxu0
    %1201 = vmatpush.bf16.msra.mxu0 %v1031
    %1202 = vmatpush.bf16.msra.mxu0 %v1025
    %1203 = vmatpush.bf16.msra.mxu0 %v1019
    %1204 = vmatpush.bf16.msra.mxu0 %v1013
    %1205 = vmatpush.bf16.msra.mxu0 %v1007
    %1206 = vmatpush.bf16.msra.mxu0 %v1001
    %1207 = vmatpush.bf16.msra.mxu0 %v995
    %1208 = vmatpush.bf16.msra.mxu0 %v989
    %1209 = vmatmul.bf16.gmra.mxu0 %v540
    %v1210 = vpop.f32.mrf.mxu0
    %v1211 = vadd.f32 %v1197, %v1210
    %v1212 = vpop.f32.mrf.mxu0
    %v1213 = vadd.f32 %v1199, %v1212
    %1214 = vdwg.mxu0
    %1215 = vmatpush.bf16.msra.mxu0 %v984
    %1216 = vmatpush.bf16.msra.mxu0 %v978
    %1217 = vmatpush.bf16.msra.mxu0 %v972
    %1218 = vmatpush.bf16.msra.mxu0 %v966
    %1219 = vmatpush.bf16.msra.mxu0 %v960
    %1220 = vmatpush.bf16.msra.mxu0 %v954
    %1221 = vmatpush.bf16.msra.mxu0 %v948
    %1222 = vmatpush.bf16.msra.mxu0 %v942
    %1223 = vmatmul.bf16.gmra.mxu0 %v539
    %v1224 = vpop.f32.mrf.mxu0
    %v1225 = vadd.f32 %v642, %v1224
    %v1226 = vpop.f32.mrf.mxu0
    %v1227 = vadd.f32 %v642, %v1226
    %1228 = vdwg.mxu0
    %1229 = vmatpush.bf16.msra.mxu0 %v1032
    %1230 = vmatpush.bf16.msra.mxu0 %v1026
    %1231 = vmatpush.bf16.msra.mxu0 %v1020
    %1232 = vmatpush.bf16.msra.mxu0 %v1014
    %1233 = vmatpush.bf16.msra.mxu0 %v1008
    %1234 = vmatpush.bf16.msra.mxu0 %v1002
    %1235 = vmatpush.bf16.msra.mxu0 %v996
    %1236 = vmatpush.bf16.msra.mxu0 %v990
    %1237 = vmatmul.bf16.gmra.mxu0 %v540
    %v1238 = vpop.f32.mrf.mxu0
    %v1239 = vadd.f32 %v1225, %v1238
    %v1240 = vpop.f32.mrf.mxu0
    %v1241 = vadd.f32 %v1227, %v1240
    %1242 = vdwg.mxu0
    %1243 = vmatpush.bf16.msra.mxu0 %v985
    %1244 = vmatpush.bf16.msra.mxu0 %v979
    %1245 = vmatpush.bf16.msra.mxu0 %v973
    %1246 = vmatpush.bf16.msra.mxu0 %v967
    %1247 = vmatpush.bf16.msra.mxu0 %v961
    %1248 = vmatpush.bf16.msra.mxu0 %v955
    %1249 = vmatpush.bf16.msra.mxu0 %v949
    %1250 = vmatpush.bf16.msra.mxu0 %v943
    %1251 = vmatmul.bf16.gmra.mxu0 %v539
    %v1252 = vpop.f32.mrf.mxu0
    %v1253 = vadd.f32 %v643, %v1252
    %v1254 = vpop.f32.mrf.mxu0
    %v1255 = vadd.f32 %v643, %v1254
    %1256 = vdwg.mxu0
    %1257 = vmatpush.bf16.msra.mxu0 %v1033
    %1258 = vmatpush.bf16.msra.mxu0 %v1027
    %1259 = vmatpush.bf16.msra.mxu0 %v1021
    %1260 = vmatpush.bf16.msra.mxu0 %v1015
    %1261 = vmatpush.bf16.msra.mxu0 %v1009
    %1262 = vmatpush.bf16.msra.mxu0 %v1003
    %1263 = vmatpush.bf16.msra.mxu0 %v997
    %1264 = vmatpush.bf16.msra.mxu0 %v991
    %1265 = vmatmul.bf16.gmra.mxu0 %v540
    %v1266 = vpop.f32.mrf.mxu0
    %v1267 = vadd.f32 %v1253, %v1266
    %v1268 = vpop.f32.mrf.mxu0
    %v1269 = vadd.f32 %v1255, %v1268
    %1270 = vdwg.mxu0
    %1271 = vmatpush.bf16.msra.mxu0 %v986
    %1272 = vmatpush.bf16.msra.mxu0 %v980
    %1273 = vmatpush.bf16.msra.mxu0 %v974
    %1274 = vmatpush.bf16.msra.mxu0 %v968
    %1275 = vmatpush.bf16.msra.mxu0 %v962
    %1276 = vmatpush.bf16.msra.mxu0 %v956
    %1277 = vmatpush.bf16.msra.mxu0 %v950
    %1278 = vmatpush.bf16.msra.mxu0 %v944
    %1279 = vmatmul.bf16.gmra.mxu0 %v539
    %v1280 = vpop.f32.mrf.mxu0
    %v1281 = vadd.f32 %v644, %v1280
    %v1282 = vpop.f32.mrf.mxu0
    %v1283 = vadd.f32 %v644, %v1282
    %1284 = vdwg.mxu0
    %1285 = vmatpush.bf16.msra.mxu0 %v1034
    %1286 = vmatpush.bf16.msra.mxu0 %v1028
    %1287 = vmatpush.bf16.msra.mxu0 %v1022
    %1288 = vmatpush.bf16.msra.mxu0 %v1016
    %1289 = vmatpush.bf16.msra.mxu0 %v1010
    %1290 = vmatpush.bf16.msra.mxu0 %v1004
    %1291 = vmatpush.bf16.msra.mxu0 %v998
    %1292 = vmatpush.bf16.msra.mxu0 %v992
    %1293 = vmatmul.bf16.gmra.mxu0 %v540
    %v1294 = vpop.f32.mrf.mxu0
    %v1295 = vadd.f32 %v1281, %v1294
    %v1296 = vpop.f32.mrf.mxu0
    %v1297 = vadd.f32 %v1283, %v1296
    %1298 = vdwg.mxu0
    %v1299 = vmax.f32 %v1155, 0.0
    %v1300 = vmax.f32 %v1183, 0.0
    %v1301 = vmax.f32 %v1211, 0.0
    %v1302 = vmax.f32 %v1239, 0.0
    %v1303 = vmax.f32 %v1267, 0.0
    %v1304 = vmax.f32 %v1295, 0.0
    %v1305 = vmax.f32 %v1157, 0.0
    %v1306 = vmax.f32 %v1185, 0.0
    %v1307 = vmax.f32 %v1213, 0.0
    %v1308 = vmax.f32 %v1241, 0.0
    %v1309 = vmax.f32 %v1269, 0.0
    %v1310 = vmax.f32 %v1297, 0.0
    %v1311 = vld [vmem:[#allocation13] sm:$0x3f]
    %v1313 = vperm.slane %v1311, 0
    %v1314 = vperm.slane %v1311, 1
    %v1315 = vperm.slane %v1311, 2
    %v1316 = vperm.slane %v1311, 3
    %v1317 = vperm.slane %v1311, 4
    %v1318 = vperm.slane %v1311, 5
    %v1325 = vmul.f32 %v1299, %v1313
    %v1326 = vmul.f32 %v1300, %v1314
    %v1327 = vmul.f32 %v1301, %v1315
    %v1328 = vmul.f32 %v1302, %v1316
    %v1329 = vmul.f32 %v1303, %v1317
    %v1330 = vmul.f32 %v1304, %v1318
    %v1331 = vmul.f32 %v1305, %v1313
    %v1332 = vmul.f32 %v1306, %v1314
    %v1333 = vmul.f32 %v1307, %v1315
    %v1334 = vmul.f32 %v1308, %v1316
    %v1335 = vmul.f32 %v1309, %v1317
    %v1336 = vmul.f32 %v1310, %v1318
    %v1337 = vadd.f32 %v1325, %v1326
    %1338 = vadd.xlane.f32.xlu0 %v1337
    %v1339 = vpop.xlane.xlu0 %1338
    %v1340 = vadd.f32 %v1331, %v1332
    %1341 = vadd.xlane.f32.xlu0 %v1340
    %v1342 = vpop.xlane.xlu0 %1341
    %v1343 = vadd.f32 %v1327, %v1328
    %1344 = vadd.xlane.f32.xlu0 %v1343
    %v1345 = vpop.xlane.xlu0 %1344
    %v1346 = vadd.f32 %v1333, %v1334
    %1347 = vadd.xlane.f32.xlu0 %v1346
    %v1348 = vpop.xlane.xlu0 %1347
    %v1349 = vadd.f32 %v1329, %v1330
    %1350 = vadd.xlane.f32.xlu0 %v1349
    %v1351 = vpop.xlane.xlu0 %1350
    %v1352 = vadd.f32 %v1335, %v1336
    %1353 = vadd.xlane.f32.xlu0 %v1352
    %v1354 = vpop.xlane.xlu0 %1353
    %v1355 = vld [vmem:[%s0] sm:$0xff]
    %v1356 = vld [vmem:[%s0 + $0x8] sm:$0xff]
    %vm1357 = vcmp.eq.s32.totalorder %v1355, 0
    %vm1358 = vcmp.eq.s32.totalorder %v1356, 0
    %s1359 = sld [smem:[#allocation14]]
    %v1360 = vstv %s1359
    %v1361 = vadd.f32 %v1339, %v1360
    %v1362 = vadd.f32 %v1342, %v1360
    %vm1363 = vcmp.eq.s32.totalorder %v1355, 1
    %vm1364 = vcmp.eq.s32.totalorder %v1356, 1
    %s1365 = sld [smem:[#allocation14 + $0x1]]
    %v1366 = vstv %s1365
    %v1367 = vadd.f32 %v1345, %v1366
    %v1368 = vadd.f32 %v1348, %v1366
    %s1369 = sld [smem:[#allocation14 + $0x2]]
    %v1370 = vstv %s1369
    %v1371 = vadd.f32 %v1351, %v1370
    %v1372 = vadd.f32 %v1354, %v1370
    %v1373 = vsel %vm1363, %v1367, %v1371
    %v1374 = vsel %vm1364, %v1368, %v1372
    %v1375 = vsel %vm1357, %v1361, %v1373
    %v1376 = vsel %vm1358, %v1362, %v1374
    %vm1377 = vcmask 7168
    %1378 = vst.msk [vmem:[%s12] sm:$0xff] %vm1377, %v1375
    %1379 = vst.msk [vmem:[%s12 + $0x8] sm:$0xff] %vm1377, %v1376
    // Predicated region
    $region82: #{tpu_custom_call.1} parent=1 // pred_check
      _
    $region83: #{tpu_custom_call.1} parent=1 // pred_check_branch
      %1381 = sbr.rel (0) target = $region85
    $region84: #{tpu_custom_call.1} parent=1 // pred_region
      _
    $region85: #{tpu_custom_call.1} parent=1 // pred_fallthru
      _
    // Predicated region
    $region86: #{tpu_custom_call.1} parent=1 // pred_check
      _
    $region87: #{tpu_custom_call.1} parent=1 // pred_check_branch
      %1383 = sbr.rel (0) target = $region89
    $region88: #{tpu_custom_call.1} parent=1 // pred_region
      _
    $region89: #{tpu_custom_call.1} parent=1 // pred_fallthru
      _
    %1384 = vsyncpa [#allocation3], 1
    %1385 = vsyncpa [#allocation6], 1
    %1386 = vsyncpa [#allocation9], 1
    %1387 = vsyncpa [#allocation12], 1
    %1388 = vsyncpa [#allocation4], 1

</llo_original>
